<compile_context>
chip_gen: v6e
topology: v6e:2x2x1
jax: 0.10.0
libtpu: 0.0.40
codegen_flags: <defaults>
</compile_context>

<pallas_src>
import jax
import jax.numpy as jnp
from jax import lax
from jax.experimental import pallas as pl
from jax.experimental.pallas import tpu as pltpu


def _round_up(x, m):
    return -(-x // m) * m


def _cdiv(a, b):
    return -(-a // b)


def _vmem_budget():
    """(per-block byte target, total scoped-VMEM allowance) for this chip."""
    try:
        cap = int(pltpu.get_tpu_info().vmem_capacity_bytes)
    except Exception:
        cap = 64 * 1024 * 1024          # conservative fallback (v7x-sized)
    vmem_allow = min(int(cap * 0.7), 80 * 1024 * 1024)
    block_target = 12 * 1024 * 1024 if cap >= 100 * 1024 * 1024 else 10 * 1024 * 1024
    return block_target, vmem_allow


# --------------------------------------------------------------------------- #
# Path 1: whole flattened planes per block (lane-dense for any W).
# --------------------------------------------------------------------------- #
def _make_flat_kernel(W, Bp, P, ragged):
    def kernel(x_ref, mh_ref, ov_ref, oh_ref):
        x = x_ref[...].astype(jnp.float32)                    # (Bp, L)
        if ragged:
            # Last plane-block may run past P: zero the invalid rows.  All
            # diffs below are intra-row, so zeroed rows contribute exactly 0
            # (and this also kills any NaN garbage from the OOB DMA region).
            valid = P - pl.program_id(0) * Bp
            row = lax.broadcasted_iota(jnp.int32, (Bp, 1), 0)
            x = jnp.where(row < valid, x, 0.0)
        # Vertical diffs: every (k, k+W) pair inside a flattened plane is a
        # valid H-neighbour pair -> no mask needed at all.
        sv = jnp.sum(jnp.abs(x[:, W:] - x[:, :-W]))
        # Horizontal diffs: (k, k+1) pairs with the row seams removed by the
        # precomputed, VMEM-resident mask (1, L-1).
        sh = jnp.sum(jnp.abs(x[:, 1:] - x[:, :-1]) * mh_ref[...])
        ov_ref[...] = jnp.reshape(sv, (1, 1, 1))
        oh_ref[...] = jnp.reshape(sh, (1, 1, 1))
    return kernel


# --------------------------------------------------------------------------- #
# Path 2: plane too big for one block -> row-chunked 3-D view with seam carry.
# --------------------------------------------------------------------------- #
def _make_chunk_kernel(H, nr, ragged):
    def kernel(x_ref, ov_ref, oh_ref, carry_ref):
        j = pl.program_id(1)
        x = x_ref[...].astype(jnp.float32)                    # (1, nr, W)
        if ragged:
            vr = H - j * nr                                   # valid rows here
            row = lax.broadcasted_iota(jnp.int32, (1, nr, 1), 1)
            x = jnp.where(row < vr, x, 0.0)
        # Horizontal diffs (intra-row; zeroed padding rows contribute 0).
        sh = jnp.sum(jnp.abs(x[:, :, 1:] - x[:, :, :-1]))
        # Vertical diffs within the chunk.
        dv = jnp.abs(x[:, 1:, :] - x[:, :-1, :])              # (1, nr-1, W)
        if ragged:
            vr = H - j * nr
            rowd = lax.broadcasted_iota(jnp.int32, (1, nr - 1, 1), 1)
            dv = jnp.where(rowd + 1 < vr, dv, 0.0)
        sv = jnp.sum(dv)
        # Vertical diff across the chunk seam (previous chunk's last row).
        @pl.when(j == 0)
        def _():
            carry_ref[...] = x[:, 0:1, :]                     # seam term -> 0
        sv = sv + jnp.sum(jnp.abs(x[:, 0:1, :] - carry_ref[...]))
        carry_ref[...] = x[:, nr - 1:nr, :]
        ov_ref[...] = jnp.reshape(sv, (1, 1, 1, 1))
        oh_ref[...] = jnp.reshape(sh, (1, 1, 1, 1))
    return kernel


def _tv_sums(pred, block_budget_bytes=None):
    """Returns (sum |vertical diffs|, sum |horizontal diffs|) as f32 scalars."""
    N, C, H, W = pred.shape
    assert H >= 2 and W >= 2, "TV loss needs H >= 2 and W >= 2"
    P = N * C
    L = H * W
    itemsize = jnp.dtype(pred.dtype).itemsize

    block_target, vmem_allow = _vmem_budget()
    if block_budget_bytes is not None:               # test hook
        block_target = int(block_budget_bytes)

    lane_row_bytes = _round_up(L, 128) * itemsize    # one 8-sublane row group
    plane_unit = 8 * lane_row_bytes
    mask_unit = 8 * _round_up(L - 1, 128) * 4        # (1, L-1) f32, VMEM-padded
    x_allow = min(block_target,
                  (vmem_allow - 2 * mask_unit - 2 * 1024 * 1024) // 2)

    if plane_unit <= x_allow:
        # ---------------- flat whole-plane path ----------------
        x2d = pred.reshape(P, L)                     # free reshape of NCHW
        rows_fit = max(8, (x_allow // lane_row_bytes) // 8 * 8)
        Bp = P if rows_fit >= P else rows_fit        # == P, or a multiple of 8
        n_p = _cdiv(P, Bp)
        ragged = (P % Bp) != 0

        idx = jnp.arange(L - 1, dtype=jnp.int32)
        mask_h = ((idx % W) != (W - 1)).astype(jnp.float32).reshape(1, L - 1)

        kernel = _make_flat_kernel(W, Bp, P, ragged)
        ov, oh = pl.pallas_call(
            kernel,
            out_shape=(jax.ShapeDtypeStruct((n_p, 1, 1), jnp.float32),
                       jax.ShapeDtypeStruct((n_p, 1, 1), jnp.float32)),
            grid_spec=pltpu.PrefetchScalarGridSpec(
                num_scalar_prefetch=0,
                grid=(n_p,),
                in_specs=[pl.BlockSpec((Bp, L), lambda i: (i, 0)),
                          pl.BlockSpec((1, L - 1), lambda i: (0, 0))],
                out_specs=(pl.BlockSpec((1, 1, 1), lambda i: (i, 0, 0)),
                           pl.BlockSpec((1, 1, 1), lambda i: (i, 0, 0))),
            ),
            compiler_params=pltpu.CompilerParams(
                dimension_semantics=("parallel",),
                vmem_limit_bytes=vmem_allow),
        )(x2d, mask_h)
        return jnp.sum(ov), jnp.sum(oh)

    # ---------------- row-chunked big-plane path ----------------
    # Planes this large virtually always have W >= 128, so (1, nr, W) blocks
    # are already lane-dense; no flattening / seam mask needed here.
    x3 = pred.reshape(P, H, W)                       # free reshape of NCHW
    row_bytes = _round_up(W, 128) * itemsize
    nr = max(8, (block_target // row_bytes) // 8 * 8)
    nr = min(nr, _round_up(H, 8))
    n_l = _cdiv(H, nr)
    ragged = (H % nr) != 0

    kernel = _make_chunk_kernel(H, nr, ragged)
    ov, oh = pl.pallas_call(
        kernel,
        out_shape=(jax.ShapeDtypeStruct((P, n_l, 1, 1), jnp.float32),
                   jax.ShapeDtypeStruct((P, n_l, 1, 1), jnp.float32)),
        grid_spec=pltpu.PrefetchScalarGridSpec(
            num_scalar_prefetch=0,
            grid=(P, n_l),
            in_specs=[pl.BlockSpec((1, nr, W), lambda i, j: (i, j, 0))],
            out_specs=(pl.BlockSpec((1, 1, 1, 1), lambda i, j: (i, j, 0, 0)),
                       pl.BlockSpec((1, 1, 1, 1), lambda i, j: (i, j, 0, 0))),
            scratch_shapes=[pltpu.VMEM((1, 1, W), jnp.float32)],
        ),
        compiler_params=pltpu.CompilerParams(
            dimension_semantics=("parallel", "arbitrary"),
            vmem_limit_bytes=vmem_allow),
    )(x3)
    return jnp.sum(ov), jnp.sum(oh)


def weighted_tv_loss(pred, weight=None, loss_weight=1.0, reduction="mean"):
    """JAX/Pallas equivalent of basicsr WeightedTVLoss.forward (weight=None)."""
    if reduction not in ("mean", "sum"):
        raise ValueError(
            f"Unsupported reduction mode: {reduction}. Supported ones are: mean | sum")
    if weight is not None:
        # TODO(synk): element-wise weighted path (weight-normalised mean) not implemented.
        raise NotImplementedError("weight is not supported in this Pallas kernel")

    N, C, H, W = pred.shape
    y_sum, x_sum = _tv_sums(pred)

    if reduction == "mean":
        y_loss = y_sum / jnp.float32(N * C * (H - 1) * W)
        x_loss = x_sum / jnp.float32(N * C * H * (W - 1))
    else:  # 'sum'
        y_loss, x_loss = y_sum, x_sum

    # In the PyTorch module each sub-loss is scaled by loss_weight inside
    # L1Loss.forward, then summed.
    lw = jnp.float32(loss_weight)
    return lw * x_loss + lw * y_loss


def _reference(pred, loss_weight=1.0, reduction="mean"):
    red = jnp.mean if reduction == "mean" else jnp.sum
    y = red(jnp.abs(pred[:, :, :-1, :] - pred[:, :, 1:, :]))
    x = red(jnp.abs(pred[:, :, :, :-1] - pred[:, :, :, 1:]))
    return loss_weight * (x + y)


if __name__ == "__main__":
    # 1) W < 128: flat lane-dense path (no transpose, no pad).
    pred = jax.random.normal(jax.random.PRNGKey(0), (2, 4, 16, 16), dtype=jnp.float32)
    loss = jax.block_until_ready(jax.jit(weighted_tv_loss)(pred))
    ref = _reference(pred)
    assert jnp.allclose(loss, ref, rtol=1e-5, atol=1e-5), (loss, ref)

    # 2) W == 128 lanes, multi-plane block, flat path.
    pred2 = jax.random.normal(jax.random.PRNGKey(1), (1, 2, 8, 128), dtype=jnp.float32)
    loss2 = jax.block_until_ready(jax.jit(weighted_tv_loss)(pred2))
    ref2 = _reference(pred2)
    assert jnp.allclose(loss2, ref2, rtol=1e-5, atol=1e-5), (loss2, ref2)

    # 3) Row-chunked path (forced via a tiny block budget): exercises the
    #    carried-seam scratch and the ragged last chunk.
    pred3 = jax.random.normal(jax.random.PRNGKey(2), (1, 1, 72, 64), dtype=jnp.float32)
    y3, x3 = _tv_sums(pred3, block_budget_bytes=16 * 1024)
    y3, x3 = jax.block_until_ready((y3, x3))
    loss3 = x3 / jnp.float32(1 * 1 * 72 * 63) + y3 / jnp.float32(1 * 1 * 71 * 64)
    ref3 = _reference(pred3)
    assert jnp.allclose(loss3, ref3, rtol=1e-5, atol=1e-5), (loss3, ref3)

    print("KERNEL_OK")
</pallas_src>

<mosaic_0001>
module attributes {stable_mosaic.version = 11 : i64} {
  func.func @kernel(%arg0: i32, %arg1: memref<8x256xf32, #tpu.memory_space<vmem>>, %arg2: memref<1x255xf32, #tpu.memory_space<vmem>>, %arg3: memref<1x1x1xf32, #tpu.memory_space<vmem>>, %arg4: memref<1x1x1xf32, #tpu.memory_space<vmem>>) attributes {dimension_semantics = [#tpu.dimension_semantics<parallel>], iteration_bounds = array<i64: 1>, scalar_prefetch = 0 : i64, scratch_operands = 0 : i64, tpu.core_type = #tpu.core_type<tc>, window_params = [{transform_indices = @transform_0, window_bounds = array<i64: 8, 256>}, {pipeline_mode = #tpu.pipeline_mode<synchronous>, transform_indices = @transform_1, window_bounds = array<i64: 1, 255>}, {transform_indices = @transform_2, window_bounds = array<i64: 1, 1, 1>}, {transform_indices = @transform_3, window_bounds = array<i64: 1, 1, 1>}]} {
    %c0 = arith.constant 0 : index
    %c0_0 = arith.constant 0 : index
    %0 = vector.load %arg1[%c0, %c0_0] : memref<8x256xf32, #tpu.memory_space<vmem>>, vector<8x256xf32>
    %1 = vector.extract_strided_slice %0 {offsets = [0, 16], sizes = [8, 240], strides = [1, 1]} : vector<8x256xf32> to vector<8x240xf32>
    %2 = vector.extract_strided_slice %0 {offsets = [0, 0], sizes = [8, 240], strides = [1, 1]} : vector<8x256xf32> to vector<8x240xf32>
    %3 = arith.subf %1, %2 : vector<8x240xf32>
    %4 = math.absf %3 : vector<8x240xf32>
    %5 = vector.shape_cast %4 : vector<8x240xf32> to vector<1x8x240xf32>
    %cst = arith.constant dense<0.000000e+00> : vector<1xf32>
    %6 = vector.multi_reduction <add>, %5, %cst [1, 2] : vector<1x8x240xf32> to vector<1xf32>
    %7 = vector.shape_cast %6 : vector<1xf32> to vector<1x1x1xf32>
    %8 = vector.extract %7[0, 0, 0] : f32 from vector<1x1x1xf32>
    %9 = vector.extract_strided_slice %0 {offsets = [0, 1], sizes = [8, 255], strides = [1, 1]} : vector<8x256xf32> to vector<8x255xf32>
    %10 = vector.extract_strided_slice %0 {offsets = [0, 0], sizes = [8, 255], strides = [1, 1]} : vector<8x256xf32> to vector<8x255xf32>
    %11 = arith.subf %9, %10 : vector<8x255xf32>
    %12 = math.absf %11 : vector<8x255xf32>
    %c0_1 = arith.constant 0 : index
    %c0_2 = arith.constant 0 : index
    %13 = vector.load %arg2[%c0_1, %c0_2] : memref<1x255xf32, #tpu.memory_space<vmem>>, vector<1x255xf32>
    %14 = vector.broadcast %13 : vector<1x255xf32> to vector<8x255xf32>
    %15 = arith.mulf %12, %14 : vector<8x255xf32>
    %16 = vector.shape_cast %15 : vector<8x255xf32> to vector<1x8x255xf32>
    %cst_3 = arith.constant dense<0.000000e+00> : vector<1xf32>
    %17 = vector.multi_reduction <add>, %16, %cst_3 [1, 2] : vector<1x8x255xf32> to vector<1xf32>
    %18 = vector.shape_cast %17 : vector<1xf32> to vector<1x1x1xf32>
    %19 = vector.extract %18[0, 0, 0] : f32 from vector<1x1x1xf32>
    %20 = vector.broadcast %8 : f32 to vector<1x1x1xf32>
    %c0_4 = arith.constant 0 : index
    %c0_5 = arith.constant 0 : index
    %c0_6 = arith.constant 0 : index
    %21 = vector.load %arg3[%c0_4, %c0_5, %c0_6] : memref<1x1x1xf32, #tpu.memory_space<vmem>>, vector<1x1x1xf32>
    tpu.vector_store %arg3[%c0_4, %c0_5, %c0_6], %20 {strides = array<i32>} : memref<1x1x1xf32, #tpu.memory_space<vmem>>, vector<1x1x1xf32>,
    %22 = vector.broadcast %19 : f32 to vector<1x1x1xf32>
    %c0_7 = arith.constant 0 : index
    %c0_8 = arith.constant 0 : index
    %c0_9 = arith.constant 0 : index
    %23 = vector.load %arg4[%c0_7, %c0_8, %c0_9] : memref<1x1x1xf32, #tpu.memory_space<vmem>>, vector<1x1x1xf32>
    tpu.vector_store %arg4[%c0_7, %c0_8, %c0_9], %22 {strides = array<i32>} : memref<1x1x1xf32, #tpu.memory_space<vmem>>, vector<1x1x1xf32>,
    return
  }
  func.func @transform_0(%arg0: i32) -> (i32, i32) {
    %c0_i32 = arith.constant 0 : i32
    %c0_i32_0 = arith.constant 0 : i32
    return %arg0, %c0_i32 : i32, i32
  }
  func.func @transform_1(%arg0: i32) -> (i32, i32) {
    %c0_i32 = arith.constant 0 : i32
    %c0_i32_0 = arith.constant 0 : i32
    %c0_i32_1 = arith.constant 0 : i32
    return %c0_i32, %c0_i32_0 : i32, i32
  }
  func.func @transform_2(%arg0: i32) -> (i32, i32, i32) {
    %c0_i32 = arith.constant 0 : i32
    %c0_i32_0 = arith.constant 0 : i32
    %c0_i32_1 = arith.constant 0 : i32
    return %arg0, %c0_i32, %c0_i32_0 : i32, i32, i32
  }
  func.func @transform_3(%arg0: i32) -> (i32, i32, i32) {
    %c0_i32 = arith.constant 0 : i32
    %c0_i32_0 = arith.constant 0 : i32
    %c0_i32_1 = arith.constant 0 : i32
    return %arg0, %c0_i32, %c0_i32_0 : i32, i32, i32
  }
}

</mosaic_0001>

<llo_original>
// kernel: weighted_tv_loss.1
$region0: #{weighted_tv_loss.1}
  #allocation0 [shape = 'u32[]', space=smem, size = 0x4, offset = 0x4, fixed_abs, tag = 'smem constant byte address 0x4 - core index']
  #allocation1 [shape = 'u32[144,128]{1,0:T(1,128)}', space=vmem, size = 0x12000, scoped, tag = 'internal scratch']
  %s0 = inlined_call_operand.vmem [shape: f32[8,256], index: 0, kind: input, shape index: {}]
  %s1 = inlined_call_operand.vmem [shape: f32[1,255], index: 1, kind: input, shape index: {}]
  %s2 = inlined_call_operand.hbm [shape: f32[1,1,1], index: 2, kind: output, shape index: {0}]
  %s3 = inlined_call_operand.hbm [shape: f32[1,1,1], index: 3, kind: output, shape index: {1}]
  %4 = xla_tuple %s2, %s3
  %s5 = sld [smem:[#allocation0]]
  $region26: #{weighted_tv_loss.1} parent=0
    _
  %s7 = ssub.s32 1, %s5
  %s8 = scalar_select 0, %s7, %s5
  $region1: #{weighted_tv_loss.1} parent=0
    #allocation2 [shape = 'u8[512]{0}', space=vmem, size = 0x400, scoped, tag = 'output window, operand 0, single buffered']
    #allocation3 [shape = 's32[1]{0}', space=sflag, size = 0x4, scoped, tag = 'scoped memory for weighted_tv_loss.1']
    #allocation4 [shape = 'u8[512]{0}', space=vmem, size = 0x400, scoped, tag = 'output window, operand 1, single buffered']
    #allocation5 [shape = 's32[1]{0}', space=sflag, size = 0x4, scoped, tag = 'scoped memory for weighted_tv_loss.1']
    %9 = vsyncpa [#allocation3], 0
    %10 = vsyncpa [#allocation5], 0
    // Predicated region
    $region2: #{weighted_tv_loss.1} parent=1 // pred_check
      _
    $region3: #{weighted_tv_loss.1} parent=1 // pred_check_branch
      %12 = sbr.rel (0) target = $region5
    $region4: #{weighted_tv_loss.1} parent=1 // pred_region
      _
    $region5: #{weighted_tv_loss.1} parent=1 // pred_fallthru
      _
    // Predicated region
    $region6: #{weighted_tv_loss.1} parent=1 // pred_check
      _
    $region7: #{weighted_tv_loss.1} parent=1 // pred_check_branch
      %14 = sbr.rel (0) target = $region9
    $region8: #{weighted_tv_loss.1} parent=1 // pred_region
      _
    $region9: #{weighted_tv_loss.1} parent=1 // pred_fallthru
      _
    %v15 = vld [vmem:[%s0] sm:$0xff]
    %v16 = vld [vmem:[%s0 + $0x8] sm:$0xff]
    %19 = vrot.lane.b32.xlu0 %v15, 16
    %v20 = vpop.permute.xlu0 %19
    %21 = vrot.lane.b32.xlu0 %v16, 16
    %v22 = vpop.permute.xlu0 %21
    %vm23 = vcmask 130048
    %v24 = vsel %vm23, %v20, %v22
    %v27 = vsub.f32 %v15, %v20
    %v28 = vsub.f32 %v16, %v24
    %v29 = vand.u32 2147483647, %v27
    %v30 = vand.u32 2147483647, %v28
    %33 = vrot.lane.b32.xlu0 %v29, 112
    %v34 = vpop.permute.xlu0 %33
    %35 = vrot.lane.b32.xlu0 %v30, 112
    %v36 = vpop.permute.xlu0 %35
    %vm37 = vcmask 916480
    %v38 = vsel %vm37, %v34, %v36
    %v41 = vsel %vm37, %v36, 0.0
    %v42 = vadd.f32 %v38, %v41
    %43 = vadd.xlane.f32.xlu0 %v42
    %v44 = vpop.xlane.xlu0 %43
    %v45 = vrot.slane %v44, 4
    %v46 = vadd.f32 %v44, %v45
    %v47 = vrot.slane %v46, 2
    %v48 = vadd.f32 %v46, %v47
    %v49 = vrot.slane %v48, 1
    %v50 = vadd.f32 %v48, %v49
    %s51 = vtos %v50
    %52 = vrot.lane.b32.xlu0 %v15, 1
    %v53 = vpop.permute.xlu0 %52
    %54 = vrot.lane.b32.xlu0 %v16, 1
    %v55 = vpop.permute.xlu0 %54
    %vm56 = vcmask 7168
    %v57 = vsel %vm56, %v53, %v55
    %v60 = vsub.f32 %v15, %v53
    %v61 = vsub.f32 %v16, %v57
    %v62 = vand.u32 2147483647, %v60
    %v63 = vand.u32 2147483647, %v61
    %v64 = vld [vmem:[%s1] sm:$0x3]
    %v66 = vlaneseq
    %v67 = vshrl.u32 %v66, 7
    %v68 = vsub.s32 0, %v67
    %v69 = vrot.slane %v64, %v68
    %v70 = vlaneseq
    %v71 = vshrl.u32 %v70, 7
    %v72 = vsub.s32 1, %v71
    %v73 = vrot.slane %v64, %v72
    %74 = vrot.lane.b32.xlu0 %v69, 1
    %v75 = vpop.permute.xlu0 %74
    %76 = vrot.lane.b32.xlu0 %v73, 1
    %v77 = vpop.permute.xlu0 %76
    %v78 = vsel %vm56, %v75, %v77
    %v81 = vmul.f32 %v62, %v75
    %v82 = vmul.f32 %v63, %v78
    %85 = vrot.lane.b32.xlu0 %v81, 127
    %v86 = vpop.permute.xlu0 %85
    %87 = vrot.lane.b32.xlu0 %v82, 127
    %v88 = vpop.permute.xlu0 %87
    %vm89 = vcmask 1039360
    %v90 = vsel %vm89, %v86, %v88
    %v93 = vsel %vm89, %v88, 0.0
    %v94 = vadd.f32 %v90, %v93
    %95 = vadd.xlane.f32.xlu0 %v94
    %v96 = vpop.xlane.xlu0 %95
    %v97 = vrot.slane %v96, 4
    %v98 = vadd.f32 %v96, %v97
    %v99 = vrot.slane %v98, 2
    %v100 = vadd.f32 %v98, %v99
    %v101 = vrot.slane %v100, 1
    %v102 = vadd.f32 %v100, %v101
    %s103 = vtos %v102
    %v104 = vstv %s51
    %vm105 = vcmask 0
    %106 = vst.msk [vmem:[#allocation2] sm:$0x1] %vm105, %v104
    %v107 = vstv %s103
    %108 = vst.msk [vmem:[#allocation4] sm:$0x1] %vm105, %v107
    // Predicated region
    $region10: #{weighted_tv_loss.1} parent=1 // pred_check
      _
    $region11: #{weighted_tv_loss.1} parent=1 // pred_check_branch
      %110 = sbr.rel (0) target = $region13
    $region12: #{weighted_tv_loss.1} parent=1 // pred_region
      %s112 = ssub.s32 16, 16
      %113 = vsyncadd [#allocation3], %s112
      %s115 = sshll.u32 [#allocation2], 4
      %s116 = int_to_ptr.vmem [resolvable:$true] %s115
      %118 = dma.vmem_to_hbm [thread:$0]  %s116, 16, %s2, [#allocation3]
    $region13: #{weighted_tv_loss.1} parent=1 // pred_fallthru
      _
    // Predicated region
    $region14: #{weighted_tv_loss.1} parent=1 // pred_check
      _
    $region15: #{weighted_tv_loss.1} parent=1 // pred_check_branch
      %120 = sbr.rel (0) target = $region17
    $region16: #{weighted_tv_loss.1} parent=1 // pred_region
      %s122 = ssub.s32 16, 16
      %123 = vsyncadd [#allocation5], %s122
      %s125 = sshll.u32 [#allocation4], 4
      %s126 = int_to_ptr.vmem [resolvable:$true] %s125
      %128 = dma.vmem_to_hbm [thread:$0]  %s126, 16, %s3, [#allocation5]
    $region17: #{weighted_tv_loss.1} parent=1 // pred_fallthru
      _
    // Predicated region
    $region18: #{weighted_tv_loss.1} parent=1 // pred_check
      _
    $region19: #{weighted_tv_loss.1} parent=1 // pred_check_branch
      %130 = sbr.rel (0) target = $region21
    $region20: #{weighted_tv_loss.1} parent=1 // pred_region
      %131 = dma.done [#allocation3], 16
    $region21: #{weighted_tv_loss.1} parent=1 // pred_fallthru
      _
    // Predicated region
    $region22: #{weighted_tv_loss.1} parent=1 // pred_check
      _
    $region23: #{weighted_tv_loss.1} parent=1 // pred_check_branch
      %133 = sbr.rel (0) target = $region25
    $region24: #{weighted_tv_loss.1} parent=1 // pred_region
      %134 = dma.done [#allocation5], 16
    $region25: #{weighted_tv_loss.1} parent=1 // pred_fallthru
      _
    %135 = vsyncpa [#allocation3], 1
    %136 = vsyncpa [#allocation5], 1

</llo_original>
